<compile_context>
chip_gen: v5e
topology: v5e:2x2
jax: 0.10.0
libtpu: 0.0.40
codegen_flags: <defaults>
</compile_context>

<pallas_src>
import functools

import numpy as np
import jax
import jax.numpy as jnp
from jax import lax
from jax.experimental import pallas as pl
from jax.experimental.pallas import tpu as pltpu

_LANES = 128
_SUBLANES = 8
STRIDE = 2


def _round_up(x, m):
    return ((x + m - 1) // m) * m


def _fused_kernel(x_ref, wt_ref, bt_ref, wbig_ref, bc_ref, cmap_ref, o_ref,
                  taps_ref, *, P, OUTW, W, kh, kw):
    """Whole forward pass for the whole batch in one invocation."""
    # ---- layer 1: ConvTranspose2d(1x1) as one MXU matmul + EUP tanh -------
    # x_ref: (8, P) channel-major, (n, h, w) flattened into lanes; rows >= Cin
    # are zero.  wt_ref: (8, 8) padded (Cmid, Cin) weight.
    v1 = jnp.dot(wt_ref[...], x_ref[...], preferred_element_type=jnp.float32)
    v2 = jnp.tanh(v1 + bt_ref[...])                       # (8, P); pad rows = 0

    # ---- build the shifted-tap stack (sublane-aligned, lane-dense) --------
    # tap(i, j)[c, p] = v2[c, p + i*W + j]; valid for every decimated output
    # position (2*oh+i < H, 2*ow+j < W), and the padded/wrapped tail is never
    # picked up by the selection matmul below.
    v2ext = jnp.concatenate(
        [v2, jnp.zeros((_SUBLANES, _LANES), jnp.float32)], axis=1)  # (8, P+128)
    for i in range(kh):
        for j in range(kw):
            s = i * W + j
            t = i * kw + j
            tap = v2 if s == 0 else v2ext[:, s:s + P]
            taps_ref[_SUBLANES * t:_SUBLANES * (t + 1), :] = tap

    # ---- layer 2: Conv2d contraction as ONE MXU matmul --------------------
    # wbig_ref: (8, 8*kh*kw) with wbig[co, 8*t + ci] = wc[co, ci, i, j].
    acc = jnp.dot(wbig_ref[...], taps_ref[...],
                  preferred_element_type=jnp.float32)               # (8, P)

    # ---- stride-2 decimation as ONE 0/1 selection matmul ------------------
    # cmap_ref[0, col] = flat input index of output column `col` (-1 padding
    # columns select nothing).
    rows = lax.broadcasted_iota(jnp.int32, (P, OUTW), 0)
    sel = (rows == cmap_ref[...]).astype(jnp.float32)               # (P, OUTW)
    out = jnp.dot(acc, sel, preferred_element_type=jnp.float32)     # (8, OUTW)

    # bias + tanh, then a single unmasked lane-dense store.
    o_ref[...] = jnp.tanh(out + bc_ref[...])


def model_forward(x_nchw, params):
    wt, bt, wc, bc = params["wt"], params["bt"], params["wc"], params["bc"]
    N, Cin, H, W = x_nchw.shape
    Cmid = wt.shape[1]
    Cout, _, kh, kw = wc.shape
    stride = STRIDE
    Ho = (H - kh) // stride + 1
    Wo = (W - kw) // stride + 1

    P = _round_up(N * H * W, _LANES)         # flattened (n,h,w) lane extent
    OUTW = _round_up(N * Ho * Wo, _LANES)    # lane-dense output slab width
    assert (kh - 1) * W + (kw - 1) <= _LANES, "tap shift exceeds zero pad"
    assert Cin <= _SUBLANES and Cmid <= _SUBLANES and Cout <= _SUBLANES

    # ---- lane-dense input re-layout (wrapper-side plumbing) ---------------
    x_flat = jnp.transpose(x_nchw, (1, 0, 2, 3)).reshape(Cin, N * H * W)
    x_pad = jnp.zeros((_SUBLANES, P), jnp.float32
                      ).at[:Cin, :N * H * W].set(x_flat)

    # ---- layer-1 weight (Cmid, Cin) padded to (8, 8) ----------------------
    wt_t = jnp.zeros((_SUBLANES, _SUBLANES), jnp.float32
                     ).at[:Cmid, :Cin].set(wt[:, :, 0, 0].T)
    bt_pad = jnp.zeros((_SUBLANES, 1), jnp.float32).at[:Cmid, 0].set(bt)

    # ---- layer-2 weight packed as (8, 8*kh*kw), K ordered (tap, ci) -------
    wc_r = jnp.transpose(wc, (0, 2, 3, 1))                 # (co, i, j, ci)
    wbig = jnp.zeros((_SUBLANES, kh, kw, _SUBLANES), jnp.float32
                     ).at[:Cout, :, :, :Cmid].set(wc_r
                     ).reshape(_SUBLANES, kh * kw * _SUBLANES)
    bc_pad = jnp.zeros((_SUBLANES, 1), jnp.float32).at[:Cout, 0].set(bc)

    # ---- decimation map: output column -> flat input index (trace-time) ---
    cols = np.arange(N * Ho * Wo)
    n_i, rem = cols // (Ho * Wo), cols % (Ho * Wo)
    oh_i, ow_i = rem // Wo, rem % Wo
    cmap = np.full((1, OUTW), -1, np.int32)
    cmap[0, :N * Ho * Wo] = n_i * H * W + stride * oh_i * W + stride * ow_i
    cmap = jnp.asarray(cmap)

    kernel = functools.partial(_fused_kernel, P=P, OUTW=OUTW, W=W,
                               kh=kh, kw=kw)
    vmem = pl.BlockSpec(memory_space=pltpu.MemorySpace.VMEM)
    out_pad = pl.pallas_call(
        kernel,
        out_shape=jax.ShapeDtypeStruct((_SUBLANES, OUTW), jnp.float32),
        in_specs=[vmem] * 6,
        out_specs=vmem,
        scratch_shapes=[pltpu.VMEM((_SUBLANES * kh * kw, P), jnp.float32)],
    )(x_pad, wt_t, bt_pad, wbig, bc_pad, cmap)

    # ---- back to NCHW (wrapper-side plumbing) ------------------------------
    out = out_pad[:Cout, :N * Ho * Wo].reshape(Cout, N, Ho, Wo)
    return jnp.transpose(out, (1, 0, 2, 3))


model_forward = jax.jit(model_forward)


def init_params(key):
    """Deterministic parameter init (PyTorch-default-style uniform bounds)."""
    k1, k2, k3, k4 = jax.random.split(key, 4)
    cin, cmid, cout = 4, 4, 5
    kh, kw = 3, 5
    # ConvTranspose2d(4, 4, 1): weight (in, out, 1, 1), bias (out,)
    bound_t = 1.0 / (cin * 1 * 1) ** 0.5
    wt = jax.random.uniform(k1, (cin, cmid, 1, 1), jnp.float32, -bound_t, bound_t)
    bt = jax.random.uniform(k2, (cmid,), jnp.float32, -bound_t, bound_t)
    # Conv2d(4, 5, (3, 5)): weight (out, in, kh, kw), bias (out,)
    bound_c = 1.0 / (cmid * kh * kw) ** 0.5
    wc = jax.random.uniform(k3, (cout, cmid, kh, kw), jnp.float32, -bound_c, bound_c)
    bc = jax.random.uniform(k4, (cout,), jnp.float32, -bound_c, bound_c)
    return {"wt": wt, "bt": bt, "wc": wc, "bc": bc}


def _reference_forward(x, params):
    """Pure-JAX reference with identical semantics (for correctness check)."""
    wt, bt, wc, bc = params["wt"], params["bt"], params["wc"], params["bc"]
    wt_mat = wt[:, :, 0, 0]
    v1 = jnp.einsum("nchw,cm->nmhw", x, wt_mat,
                    precision=lax.Precision.HIGHEST) + bt[None, :, None, None]
    v2 = jnp.tanh(v1)
    v3 = lax.conv_general_dilated(
        v2, wc, window_strides=(2, 2), padding="VALID",
        dimension_numbers=("NCHW", "OIHW", "NCHW"),
        precision=lax.Precision.HIGHEST) + bc[None, :, None, None]
    return jnp.tanh(v3)


if __name__ == "__main__":
    key = jax.random.PRNGKey(0)
    kx, kp = jax.random.split(key)
    # Small shapes consistent with the module (NCHW). Spatial 16 so the
    # (3,5)-kernel stride-2 conv has a valid output (7, 6).
    x = jax.random.normal(kx, (2, 4, 16, 16), dtype=jnp.float32)
    params = init_params(kp)

    out = jax.block_until_ready(model_forward(x, params))
    assert out.shape == (2, 5, 7, 6), out.shape
    assert out.dtype == jnp.float32

    ref = jax.block_until_ready(_reference_forward(x, params))
    max_err = float(jnp.max(jnp.abs(out - ref)))
    # Loose-ish tolerance only to accommodate MXU f32 pass decomposition;
    # any structural/indexing bug produces O(0.1..1) errors and still fails.
    assert bool(jnp.allclose(out, ref, atol=5e-3, rtol=5e-3)), max_err

    print("KERNEL_OK")
</pallas_src>

<mosaic_0001>
module attributes {stable_mosaic.version = 11 : i64} {
  func.func @_fused_kernel(%arg0: memref<8x512xf32, #tpu.memory_space<vmem>>, %arg1: memref<8x8xf32, #tpu.memory_space<vmem>>, %arg2: memref<8x1xf32, #tpu.memory_space<vmem>>, %arg3: memref<8x120xf32, #tpu.memory_space<vmem>>, %arg4: memref<8x1xf32, #tpu.memory_space<vmem>>, %arg5: memref<1x128xi32, #tpu.memory_space<vmem>>, %arg6: memref<8x128xf32, #tpu.memory_space<vmem>>, %arg7: memref<120x512xf32, #tpu.memory_space<vmem>>) attributes {dimension_semantics = [], scalar_prefetch = 0 : i64, scratch_operands = 1 : i64, tpu.core_type = #tpu.core_type<tc>} {
    %c0 = arith.constant 0 : index
    %c0_0 = arith.constant 0 : index
    %0 = vector.load %arg1[%c0, %c0_0] : memref<8x8xf32, #tpu.memory_space<vmem>>, vector<8x8xf32>
    %c0_1 = arith.constant 0 : index
    %c0_2 = arith.constant 0 : index
    %1 = vector.load %arg0[%c0_1, %c0_2] : memref<8x512xf32, #tpu.memory_space<vmem>>, vector<8x512xf32>
    %cst = arith.constant dense<0.000000e+00> : vector<8x512xf32>
    %2 = tpu.matmul %0, %1, %cst {dimension_numbers = #tpu.dot_dimension_numbers<[1], [0], [0], [1], [0, 0, 1, 1], [], []>} : vector<8x8xf32>, vector<8x512xf32>, vector<8x512xf32> -> vector<8x512xf32>
    %c0_3 = arith.constant 0 : index
    %c0_4 = arith.constant 0 : index
    %3 = vector.load %arg2[%c0_3, %c0_4] : memref<8x1xf32, #tpu.memory_space<vmem>>, vector<8x1xf32>
    %4 = vector.broadcast %3 : vector<8x1xf32> to vector<8x512xf32>
    %5 = arith.addf %2, %4 : vector<8x512xf32>
    %6 = math.tanh %5 : vector<8x512xf32>
    %cst_5 = arith.constant 0.000000e+00 : f32
    %7 = vector.broadcast %cst_5 : f32 to vector<8x128xf32>
    %8 = tpu.concatenate %6, %7 in 1 : vector<8x512xf32>, vector<8x128xf32> -> vector<8x640xf32>
    %c0_6 = arith.constant 0 : index
    %c0_7 = arith.constant 0 : index
    %9 = vector.load %arg7[%c0_6, %c0_7] : memref<120x512xf32, #tpu.memory_space<vmem>>, vector<8x512xf32>
    tpu.vector_store %arg7[%c0_6, %c0_7], %6 {strides = array<i32>} : memref<120x512xf32, #tpu.memory_space<vmem>>, vector<8x512xf32>,
    %10 = vector.extract_strided_slice %8 {offsets = [0, 1], sizes = [8, 512], strides = [1, 1]} : vector<8x640xf32> to vector<8x512xf32>
    %c8 = arith.constant 8 : index
    %c0_8 = arith.constant 0 : index
    %11 = vector.load %arg7[%c8, %c0_8] : memref<120x512xf32, #tpu.memory_space<vmem>>, vector<8x512xf32>
    tpu.vector_store %arg7[%c8, %c0_8], %10 {strides = array<i32>} : memref<120x512xf32, #tpu.memory_space<vmem>>, vector<8x512xf32>,
    %12 = vector.extract_strided_slice %8 {offsets = [0, 2], sizes = [8, 512], strides = [1, 1]} : vector<8x640xf32> to vector<8x512xf32>
    %c16 = arith.constant 16 : index
    %c0_9 = arith.constant 0 : index
    %13 = vector.load %arg7[%c16, %c0_9] : memref<120x512xf32, #tpu.memory_space<vmem>>, vector<8x512xf32>
    tpu.vector_store %arg7[%c16, %c0_9], %12 {strides = array<i32>} : memref<120x512xf32, #tpu.memory_space<vmem>>, vector<8x512xf32>,
    %14 = vector.extract_strided_slice %8 {offsets = [0, 3], sizes = [8, 512], strides = [1, 1]} : vector<8x640xf32> to vector<8x512xf32>
    %c24 = arith.constant 24 : index
    %c0_10 = arith.constant 0 : index
    %15 = vector.load %arg7[%c24, %c0_10] : memref<120x512xf32, #tpu.memory_space<vmem>>, vector<8x512xf32>
    tpu.vector_store %arg7[%c24, %c0_10], %14 {strides = array<i32>} : memref<120x512xf32, #tpu.memory_space<vmem>>, vector<8x512xf32>,
    %16 = vector.extract_strided_slice %8 {offsets = [0, 4], sizes = [8, 512], strides = [1, 1]} : vector<8x640xf32> to vector<8x512xf32>
    %c32 = arith.constant 32 : index
    %c0_11 = arith.constant 0 : index
    %17 = vector.load %arg7[%c32, %c0_11] : memref<120x512xf32, #tpu.memory_space<vmem>>, vector<8x512xf32>
    tpu.vector_store %arg7[%c32, %c0_11], %16 {strides = array<i32>} : memref<120x512xf32, #tpu.memory_space<vmem>>, vector<8x512xf32>,
    %18 = vector.extract_strided_slice %8 {offsets = [0, 16], sizes = [8, 512], strides = [1, 1]} : vector<8x640xf32> to vector<8x512xf32>
    %c40 = arith.constant 40 : index
    %c0_12 = arith.constant 0 : index
    %19 = vector.load %arg7[%c40, %c0_12] : memref<120x512xf32, #tpu.memory_space<vmem>>, vector<8x512xf32>
    tpu.vector_store %arg7[%c40, %c0_12], %18 {strides = array<i32>} : memref<120x512xf32, #tpu.memory_space<vmem>>, vector<8x512xf32>,
    %20 = vector.extract_strided_slice %8 {offsets = [0, 17], sizes = [8, 512], strides = [1, 1]} : vector<8x640xf32> to vector<8x512xf32>
    %c48 = arith.constant 48 : index
    %c0_13 = arith.constant 0 : index
    %21 = vector.load %arg7[%c48, %c0_13] : memref<120x512xf32, #tpu.memory_space<vmem>>, vector<8x512xf32>
    tpu.vector_store %arg7[%c48, %c0_13], %20 {strides = array<i32>} : memref<120x512xf32, #tpu.memory_space<vmem>>, vector<8x512xf32>,
    %22 = vector.extract_strided_slice %8 {offsets = [0, 18], sizes = [8, 512], strides = [1, 1]} : vector<8x640xf32> to vector<8x512xf32>
    %c56 = arith.constant 56 : index
    %c0_14 = arith.constant 0 : index
    %23 = vector.load %arg7[%c56, %c0_14] : memref<120x512xf32, #tpu.memory_space<vmem>>, vector<8x512xf32>
    tpu.vector_store %arg7[%c56, %c0_14], %22 {strides = array<i32>} : memref<120x512xf32, #tpu.memory_space<vmem>>, vector<8x512xf32>,
    %24 = vector.extract_strided_slice %8 {offsets = [0, 19], sizes = [8, 512], strides = [1, 1]} : vector<8x640xf32> to vector<8x512xf32>
    %c64 = arith.constant 64 : index
    %c0_15 = arith.constant 0 : index
    %25 = vector.load %arg7[%c64, %c0_15] : memref<120x512xf32, #tpu.memory_space<vmem>>, vector<8x512xf32>
    tpu.vector_store %arg7[%c64, %c0_15], %24 {strides = array<i32>} : memref<120x512xf32, #tpu.memory_space<vmem>>, vector<8x512xf32>,
    %26 = vector.extract_strided_slice %8 {offsets = [0, 20], sizes = [8, 512], strides = [1, 1]} : vector<8x640xf32> to vector<8x512xf32>
    %c72 = arith.constant 72 : index
    %c0_16 = arith.constant 0 : index
    %27 = vector.load %arg7[%c72, %c0_16] : memref<120x512xf32, #tpu.memory_space<vmem>>, vector<8x512xf32>
    tpu.vector_store %arg7[%c72, %c0_16], %26 {strides = array<i32>} : memref<120x512xf32, #tpu.memory_space<vmem>>, vector<8x512xf32>,
    %28 = vector.extract_strided_slice %8 {offsets = [0, 32], sizes = [8, 512], strides = [1, 1]} : vector<8x640xf32> to vector<8x512xf32>
    %c80 = arith.constant 80 : index
    %c0_17 = arith.constant 0 : index
    %29 = vector.load %arg7[%c80, %c0_17] : memref<120x512xf32, #tpu.memory_space<vmem>>, vector<8x512xf32>
    tpu.vector_store %arg7[%c80, %c0_17], %28 {strides = array<i32>} : memref<120x512xf32, #tpu.memory_space<vmem>>, vector<8x512xf32>,
    %30 = vector.extract_strided_slice %8 {offsets = [0, 33], sizes = [8, 512], strides = [1, 1]} : vector<8x640xf32> to vector<8x512xf32>
    %c88 = arith.constant 88 : index
    %c0_18 = arith.constant 0 : index
    %31 = vector.load %arg7[%c88, %c0_18] : memref<120x512xf32, #tpu.memory_space<vmem>>, vector<8x512xf32>
    tpu.vector_store %arg7[%c88, %c0_18], %30 {strides = array<i32>} : memref<120x512xf32, #tpu.memory_space<vmem>>, vector<8x512xf32>,
    %32 = vector.extract_strided_slice %8 {offsets = [0, 34], sizes = [8, 512], strides = [1, 1]} : vector<8x640xf32> to vector<8x512xf32>
    %c96 = arith.constant 96 : index
    %c0_19 = arith.constant 0 : index
    %33 = vector.load %arg7[%c96, %c0_19] : memref<120x512xf32, #tpu.memory_space<vmem>>, vector<8x512xf32>
    tpu.vector_store %arg7[%c96, %c0_19], %32 {strides = array<i32>} : memref<120x512xf32, #tpu.memory_space<vmem>>, vector<8x512xf32>,
    %34 = vector.extract_strided_slice %8 {offsets = [0, 35], sizes = [8, 512], strides = [1, 1]} : vector<8x640xf32> to vector<8x512xf32>
    %c104 = arith.constant 104 : index
    %c0_20 = arith.constant 0 : index
    %35 = vector.load %arg7[%c104, %c0_20] : memref<120x512xf32, #tpu.memory_space<vmem>>, vector<8x512xf32>
    tpu.vector_store %arg7[%c104, %c0_20], %34 {strides = array<i32>} : memref<120x512xf32, #tpu.memory_space<vmem>>, vector<8x512xf32>,
    %36 = vector.extract_strided_slice %8 {offsets = [0, 36], sizes = [8, 512], strides = [1, 1]} : vector<8x640xf32> to vector<8x512xf32>
    %c112 = arith.constant 112 : index
    %c0_21 = arith.constant 0 : index
    %37 = vector.load %arg7[%c112, %c0_21] : memref<120x512xf32, #tpu.memory_space<vmem>>, vector<8x512xf32>
    tpu.vector_store %arg7[%c112, %c0_21], %36 {strides = array<i32>} : memref<120x512xf32, #tpu.memory_space<vmem>>, vector<8x512xf32>,
    %c0_22 = arith.constant 0 : index
    %c0_23 = arith.constant 0 : index
    %38 = vector.load %arg3[%c0_22, %c0_23] : memref<8x120xf32, #tpu.memory_space<vmem>>, vector<8x120xf32>
    %c0_24 = arith.constant 0 : index
    %c0_25 = arith.constant 0 : index
    %39 = vector.load %arg7[%c0_24, %c0_25] : memref<120x512xf32, #tpu.memory_space<vmem>>, vector<120x512xf32>
    %cst_26 = arith.constant dense<0.000000e+00> : vector<8x512xf32>
    %40 = tpu.matmul %38, %39, %cst_26 {dimension_numbers = #tpu.dot_dimension_numbers<[1], [0], [0], [1], [0, 0, 1, 1], [], []>} : vector<8x120xf32>, vector<120x512xf32>, vector<8x512xf32> -> vector<8x512xf32>
    %41 = tpu.iota {dimensions = array<i32: 0>} : vector<512x128xi32>
    %c0_27 = arith.constant 0 : index
    %c0_28 = arith.constant 0 : index
    %42 = vector.load %arg5[%c0_27, %c0_28] : memref<1x128xi32, #tpu.memory_space<vmem>>, vector<1x128xi32>
    %43 = vector.broadcast %42 : vector<1x128xi32> to vector<512x128xi32>
    %44 = arith.cmpi eq, %41, %43 : vector<512x128xi32>
    %45 = arith.extui %44 : vector<512x128xi1> to vector<512x128xi32>
    %46 = arith.sitofp %45 : vector<512x128xi32> to vector<512x128xf32>
    %cst_29 = arith.constant dense<0.000000e+00> : vector<8x128xf32>
    %47 = tpu.matmul %40, %46, %cst_29 {dimension_numbers = #tpu.dot_dimension_numbers<[1], [0], [0], [1], [0, 0, 1, 1], [], []>} : vector<8x512xf32>, vector<512x128xf32>, vector<8x128xf32> -> vector<8x128xf32>
    %c0_30 = arith.constant 0 : index
    %c0_31 = arith.constant 0 : index
    %48 = vector.load %arg4[%c0_30, %c0_31] : memref<8x1xf32, #tpu.memory_space<vmem>>, vector<8x1xf32>
    %49 = vector.broadcast %48 : vector<8x1xf32> to vector<8x128xf32>
    %50 = arith.addf %47, %49 : vector<8x128xf32>
    %51 = math.tanh %50 : vector<8x128xf32>
    %c0_32 = arith.constant 0 : index
    %c0_33 = arith.constant 0 : index
    %52 = vector.load %arg6[%c0_32, %c0_33] : memref<8x128xf32, #tpu.memory_space<vmem>>, vector<8x128xf32>
    tpu.vector_store %arg6[%c0_32, %c0_33], %51 {strides = array<i32>} : memref<8x128xf32, #tpu.memory_space<vmem>>, vector<8x128xf32>,
    return
  }
}

</mosaic_0001>

<llo_original>
// kernel: model_forward.1
$region0: #{model_forward.1}
  #allocation0 [shape = 'u32[]', space=smem, size = 0x4, offset = 0x4, fixed_abs, tag = 'smem constant byte address 0x4 - core index']
  #allocation1 [shape = 'u32[72,128]{1,0:T(1,128)}', space=vmem, size = 0x9000, scoped, tag = 'internal scratch']
  #allocation2 [shape = 'f32[120,512]{1,0:T(8,128)}', space=vmem, size = 0x3c000, scoped, tag = 'scratch operand']
  %s0 = inlined_call_operand.vmem [shape: f32[8,512], index: 0, kind: input, shape index: {}]
  %s1 = inlined_call_operand.vmem [shape: f32[8,8], index: 1, kind: input, shape index: {}]
  %s2 = inlined_call_operand.vmem [shape: f32[8,1], index: 2, kind: input, shape index: {}]
  %s3 = inlined_call_operand.vmem [shape: f32[8,120], index: 3, kind: input, shape index: {}]
  %s4 = inlined_call_operand.vmem [shape: f32[8,1], index: 4, kind: input, shape index: {}]
  %s5 = inlined_call_operand.vmem [shape: s32[1,128], index: 5, kind: input, shape index: {}]
  %s6 = inlined_call_operand.vmem [shape: f32[8,128], index: 6, kind: output, shape index: {}]
  %s7 = sld [smem:[#allocation0]]
  $region34: #{model_forward.1} parent=0
    _
  %s9 = ssub.s32 1, %s7
  %s10 = scalar_select 0, %s9, %s7
  // Predicated region
  $region2: #{model_forward.1} parent=0 // pred_check
    _
  $region3: #{model_forward.1} parent=0 // pred_check_branch
    %12 = sbr.rel (0) target = $region5
  $region4: #{model_forward.1} parent=0 // pred_region
    _
  $region5: #{model_forward.1} parent=0 // pred_fallthru
    _
  // Predicated region
  $region6: #{model_forward.1} parent=0 // pred_check
    _
  $region7: #{model_forward.1} parent=0 // pred_check_branch
    %14 = sbr.rel (0) target = $region9
  $region8: #{model_forward.1} parent=0 // pred_region
    _
  $region9: #{model_forward.1} parent=0 // pred_fallthru
    _
  // Predicated region
  $region10: #{model_forward.1} parent=0 // pred_check
    _
  $region11: #{model_forward.1} parent=0 // pred_check_branch
    %16 = sbr.rel (0) target = $region13
  $region12: #{model_forward.1} parent=0 // pred_region
    _
  $region13: #{model_forward.1} parent=0 // pred_fallthru
    _
  // Predicated region
  $region14: #{model_forward.1} parent=0 // pred_check
    _
  $region15: #{model_forward.1} parent=0 // pred_check_branch
    %18 = sbr.rel (0) target = $region17
  $region16: #{model_forward.1} parent=0 // pred_region
    _
  $region17: #{model_forward.1} parent=0 // pred_fallthru
    _
  // Predicated region
  $region18: #{model_forward.1} parent=0 // pred_check
    _
  $region19: #{model_forward.1} parent=0 // pred_check_branch
    %20 = sbr.rel (0) target = $region21
  $region20: #{model_forward.1} parent=0 // pred_region
    _
  $region21: #{model_forward.1} parent=0 // pred_fallthru
    _
  // Predicated region
  $region22: #{model_forward.1} parent=0 // pred_check
    _
  $region23: #{model_forward.1} parent=0 // pred_check_branch
    %22 = sbr.rel (0) target = $region25
  $region24: #{model_forward.1} parent=0 // pred_region
    _
  $region25: #{model_forward.1} parent=0 // pred_fallthru
    _
  %v23 = vld [vmem:[%s1] sm:$0xff]
  %v24 = vld [vmem:[%s0] sm:$0xff]
  %v25 = vld [vmem:[%s0 + $0x8] sm:$0xff]
  %v26 = vld [vmem:[%s0 + $0x10] sm:$0xff]
  %v27 = vld [vmem:[%s0 + $0x18] sm:$0xff]
  %v28 = vld [vmem:[%s2] sm:$0xff]
  %30 = vset.pattern.permute.xlu0 0
  %31 = vperm.xlu0 %30, %v28
  %v32 = vpop.permute.xlu0 %31
  %vm34 = vcmask 64512
  %v36 = vsel %vm34, %v23, 0
  %38 = vmatpush.msra.mxu0 0.0
  %39 = vmatpush.msra.mxu0 0.0
  %40 = vmatpush.msra.mxu0 0.0
  %41 = vmatpush.msra.mxu0 0.0
  %42 = vmatpush.msra.mxu0 0.0
  %43 = vmatpush.msra.mxu0 0.0
  %44 = vmatpush.msra.mxu0 0.0
  %45 = vmatpush.msra.mxu0 0.0
  %46 = vmatpush.msra.mxu0 0.0
  %47 = vmatpush.msra.mxu0 0.0
  %48 = vmatpush.msra.mxu0 0.0
  %49 = vmatpush.msra.mxu0 0.0
  %50 = vmatpush.msra.mxu0 0.0
  %51 = vmatpush.msra.mxu0 0.0
  %52 = vmatpush.msra.mxu0 0.0
  %53 = vmatpush.msra.mxu0 %v24
  %54 = vmatmul.f32.gmra.mxu0 %v36
  %v55 = vpop.f32.mrf.mxu0
  %v56 = vadd.f32 %v32, %v55
  %57 = vdwg.mxu0
  %58 = vmatpush.msra.mxu0 0.0
  %59 = vmatpush.msra.mxu0 0.0
  %60 = vmatpush.msra.mxu0 0.0
  %61 = vmatpush.msra.mxu0 0.0
  %62 = vmatpush.msra.mxu0 0.0
  %63 = vmatpush.msra.mxu0 0.0
  %64 = vmatpush.msra.mxu0 0.0
  %65 = vmatpush.msra.mxu0 0.0
  %66 = vmatpush.msra.mxu0 0.0
  %67 = vmatpush.msra.mxu0 0.0
  %68 = vmatpush.msra.mxu0 0.0
  %69 = vmatpush.msra.mxu0 0.0
  %70 = vmatpush.msra.mxu0 0.0
  %71 = vmatpush.msra.mxu0 0.0
  %72 = vmatpush.msra.mxu0 0.0
  %73 = vmatpush.msra.mxu0 %v25
  %74 = vmatmul.f32.gmra.mxu0 %v36
  %v75 = vpop.f32.mrf.mxu0
  %v76 = vadd.f32 %v32, %v75
  %77 = vdwg.mxu0
  %78 = vmatpush.msra.mxu0 0.0
  %79 = vmatpush.msra.mxu0 0.0
  %80 = vmatpush.msra.mxu0 0.0
  %81 = vmatpush.msra.mxu0 0.0
  %82 = vmatpush.msra.mxu0 0.0
  %83 = vmatpush.msra.mxu0 0.0
  %84 = vmatpush.msra.mxu0 0.0
  %85 = vmatpush.msra.mxu0 0.0
  %86 = vmatpush.msra.mxu0 0.0
  %87 = vmatpush.msra.mxu0 0.0
  %88 = vmatpush.msra.mxu0 0.0
  %89 = vmatpush.msra.mxu0 0.0
  %90 = vmatpush.msra.mxu0 0.0
  %91 = vmatpush.msra.mxu0 0.0
  %92 = vmatpush.msra.mxu0 0.0
  %93 = vmatpush.msra.mxu0 %v26
  %94 = vmatmul.f32.gmra.mxu0 %v36
  %v95 = vpop.f32.mrf.mxu0
  %v96 = vadd.f32 %v32, %v95
  %97 = vdwg.mxu0
  %98 = vmatpush.msra.mxu0 0.0
  %99 = vmatpush.msra.mxu0 0.0
  %100 = vmatpush.msra.mxu0 0.0
  %101 = vmatpush.msra.mxu0 0.0
  %102 = vmatpush.msra.mxu0 0.0
  %103 = vmatpush.msra.mxu0 0.0
  %104 = vmatpush.msra.mxu0 0.0
  %105 = vmatpush.msra.mxu0 0.0
  %106 = vmatpush.msra.mxu0 0.0
  %107 = vmatpush.msra.mxu0 0.0
  %108 = vmatpush.msra.mxu0 0.0
  %109 = vmatpush.msra.mxu0 0.0
  %110 = vmatpush.msra.mxu0 0.0
  %111 = vmatpush.msra.mxu0 0.0
  %112 = vmatpush.msra.mxu0 0.0
  %113 = vmatpush.msra.mxu0 %v27
  %114 = vmatmul.f32.gmra.mxu0 %v36
  %v115 = vpop.f32.mrf.mxu0
  %v116 = vadd.f32 %v32, %v115
  %117 = vdwg.mxu0
  %v118 = vtanh.pop %v56
  %v119 = vtanh.pop %v76
  %v120 = vtanh.pop %v96
  %v121 = vtanh.pop %v116
  %122 = vst [vmem:[#allocation2] sm:$0xff] %v118
  %123 = vst [vmem:[#allocation2 + $0x8] sm:$0xff] %v119
  %124 = vst [vmem:[#allocation2 + $0x10] sm:$0xff] %v120
  %125 = vst [vmem:[#allocation2 + $0x18] sm:$0xff] %v121
  %131 = vrot.lane.b32.xlu0 %v118, 127
  %v132 = vpop.permute.xlu0 %131
  %133 = vrot.lane.b32.xlu0 %v119, 127
  %v134 = vpop.permute.xlu0 %133
  %135 = vrot.lane.b32.xlu0 %v120, 127
  %v136 = vpop.permute.xlu0 %135
  %137 = vrot.lane.b32.xlu0 %v121, 127
  %v138 = vpop.permute.xlu0 %137
  %139 = vrot.lane.b32.xlu0 0.0, 127
  %v140 = vpop.permute.xlu0 %139
  %vm141 = vcmask 1039360
  %v142 = vsel %vm141, %v132, %v134
  %v143 = vsel %vm141, %v134, %v136
  %v144 = vsel %vm141, %v136, %v138
  %v145 = vsel %vm141, %v138, %v140
  %150 = vst [vmem:[#allocation2 + $0x20] sm:$0xff] %v142
  %151 = vst [vmem:[#allocation2 + $0x28] sm:$0xff] %v143
  %152 = vst [vmem:[#allocation2 + $0x30] sm:$0xff] %v144
  %153 = vst [vmem:[#allocation2 + $0x38] sm:$0xff] %v145
  %154 = vrot.lane.b32.xlu0 %v118, 126
  %v155 = vpop.permute.xlu0 %154
  %156 = vrot.lane.b32.xlu0 %v119, 126
  %v157 = vpop.permute.xlu0 %156
  %158 = vrot.lane.b32.xlu0 %v120, 126
  %v159 = vpop.permute.xlu0 %158
  %160 = vrot.lane.b32.xlu0 %v121, 126
  %v161 = vpop.permute.xlu0 %160
  %162 = vrot.lane.b32.xlu0 0.0, 126
  %v163 = vpop.permute.xlu0 %162
  %vm164 = vcmask 1031168
  %v165 = vsel %vm164, %v155, %v157
  %v166 = vsel %vm164, %v157, %v159
  %v167 = vsel %vm164, %v159, %v161
  %v168 = vsel %vm164, %v161, %v163
  %173 = vst [vmem:[#allocation2 + $0x40] sm:$0xff] %v165
  %174 = vst [vmem:[#allocation2 + $0x48] sm:$0xff] %v166
  %175 = vst [vmem:[#allocation2 + $0x50] sm:$0xff] %v167
  %176 = vst [vmem:[#allocation2 + $0x58] sm:$0xff] %v168
  %177 = vrot.lane.b32.xlu0 %v118, 125
  %v178 = vpop.permute.xlu0 %177
  %179 = vrot.lane.b32.xlu0 %v119, 125
  %v180 = vpop.permute.xlu0 %179
  %181 = vrot.lane.b32.xlu0 %v120, 125
  %v182 = vpop.permute.xlu0 %181
  %183 = vrot.lane.b32.xlu0 %v121, 125
  %v184 = vpop.permute.xlu0 %183
  %185 = vrot.lane.b32.xlu0 0.0, 125
  %v186 = vpop.permute.xlu0 %185
  %vm187 = vcmask 1022976
  %v188 = vsel %vm187, %v178, %v180
  %v189 = vsel %vm187, %v180, %v182
  %v190 = vsel %vm187, %v182, %v184
  %v191 = vsel %vm187, %v184, %v186
  %196 = vst [vmem:[#allocation2 + $0x60] sm:$0xff] %v188
  %197 = vst [vmem:[#allocation2 + $0x68] sm:$0xff] %v189
  %198 = vst [vmem:[#allocation2 + $0x70] sm:$0xff] %v190
  %199 = vst [vmem:[#allocation2 + $0x78] sm:$0xff] %v191
  %200 = vrot.lane.b32.xlu0 %v118, 124
  %v201 = vpop.permute.xlu0 %200
  %202 = vrot.lane.b32.xlu0 %v119, 124
  %v203 = vpop.permute.xlu0 %202
  %204 = vrot.lane.b32.xlu0 %v120, 124
  %v205 = vpop.permute.xlu0 %204
  %206 = vrot.lane.b32.xlu0 %v121, 124
  %v207 = vpop.permute.xlu0 %206
  %208 = vrot.lane.b32.xlu0 0.0, 124
  %v209 = vpop.permute.xlu0 %208
  %vm210 = vcmask 1014784
  %v211 = vsel %vm210, %v201, %v203
  %v212 = vsel %vm210, %v203, %v205
  %v213 = vsel %vm210, %v205, %v207
  %v214 = vsel %vm210, %v207, %v209
  %219 = vst [vmem:[#allocation2 + $0x80] sm:$0xff] %v211
  %220 = vst [vmem:[#allocation2 + $0x88] sm:$0xff] %v212
  %221 = vst [vmem:[#allocation2 + $0x90] sm:$0xff] %v213
  %222 = vst [vmem:[#allocation2 + $0x98] sm:$0xff] %v214
  %223 = vrot.lane.b32.xlu0 %v118, 112
  %v224 = vpop.permute.xlu0 %223
  %225 = vrot.lane.b32.xlu0 %v119, 112
  %v226 = vpop.permute.xlu0 %225
  %227 = vrot.lane.b32.xlu0 %v120, 112
  %v228 = vpop.permute.xlu0 %227
  %229 = vrot.lane.b32.xlu0 %v121, 112
  %v230 = vpop.permute.xlu0 %229
  %231 = vrot.lane.b32.xlu0 0.0, 112
  %v232 = vpop.permute.xlu0 %231
  %vm233 = vcmask 916480
  %v234 = vsel %vm233, %v224, %v226
  %v235 = vsel %vm233, %v226, %v228
  %v236 = vsel %vm233, %v228, %v230
  %v237 = vsel %vm233, %v230, %v232
  %242 = vst [vmem:[#allocation2 + $0xa0] sm:$0xff] %v234
  %243 = vst [vmem:[#allocation2 + $0xa8] sm:$0xff] %v235
  %244 = vst [vmem:[#allocation2 + $0xb0] sm:$0xff] %v236
  %245 = vst [vmem:[#allocation2 + $0xb8] sm:$0xff] %v237
  %246 = vrot.lane.b32.xlu0 %v118, 111
  %v247 = vpop.permute.xlu0 %246
  %248 = vrot.lane.b32.xlu0 %v119, 111
  %v249 = vpop.permute.xlu0 %248
  %250 = vrot.lane.b32.xlu0 %v120, 111
  %v251 = vpop.permute.xlu0 %250
  %252 = vrot.lane.b32.xlu0 %v121, 111
  %v253 = vpop.permute.xlu0 %252
  %254 = vrot.lane.b32.xlu0 0.0, 111
  %v255 = vpop.permute.xlu0 %254
  %vm256 = vcmask 908288
  %v257 = vsel %vm256, %v247, %v249
  %v258 = vsel %vm256, %v249, %v251
  %v259 = vsel %vm256, %v251, %v253
  %v260 = vsel %vm256, %v253, %v255
  %265 = vst [vmem:[#allocation2 + $0xc0] sm:$0xff] %v257
  %266 = vst [vmem:[#allocation2 + $0xc8] sm:$0xff] %v258
  %267 = vst [vmem:[#allocation2 + $0xd0] sm:$0xff] %v259
  %268 = vst [vmem:[#allocation2 + $0xd8] sm:$0xff] %v260
  %269 = vrot.lane.b32.xlu0 %v118, 110
  %v270 = vpop.permute.xlu0 %269
  %271 = vrot.lane.b32.xlu0 %v119, 110
  %v272 = vpop.permute.xlu0 %271
  %273 = vrot.lane.b32.xlu0 %v120, 110
  %v274 = vpop.permute.xlu0 %273
  %275 = vrot.lane.b32.xlu0 %v121, 110
  %v276 = vpop.permute.xlu0 %275
  %277 = vrot.lane.b32.xlu0 0.0, 110
  %v278 = vpop.permute.xlu0 %277
  %vm279 = vcmask 900096
  %v280 = vsel %vm279, %v270, %v272
  %v281 = vsel %vm279, %v272, %v274
  %v282 = vsel %vm279, %v274, %v276
  %v283 = vsel %vm279, %v276, %v278
  %288 = vst [vmem:[#allocation2 + $0xe0] sm:$0xff] %v280
  %289 = vst [vmem:[#allocation2 + $0xe8] sm:$0xff] %v281
  %290 = vst [vmem:[#allocation2 + $0xf0] sm:$0xff] %v282
  %291 = vst [vmem:[#allocation2 + $0xf8] sm:$0xff] %v283
  %292 = vrot.lane.b32.xlu0 %v118, 109
  %v293 = vpop.permute.xlu0 %292
  %294 = vrot.lane.b32.xlu0 %v119, 109
  %v295 = vpop.permute.xlu0 %294
  %296 = vrot.lane.b32.xlu0 %v120, 109
  %v297 = vpop.permute.xlu0 %296
  %298 = vrot.lane.b32.xlu0 %v121, 109
  %v299 = vpop.permute.xlu0 %298
  %300 = vrot.lane.b32.xlu0 0.0, 109
  %v301 = vpop.permute.xlu0 %300
  %vm302 = vcmask 891904
  %v303 = vsel %vm302, %v293, %v295
  %v304 = vsel %vm302, %v295, %v297
  %v305 = vsel %vm302, %v297, %v299
  %v306 = vsel %vm302, %v299, %v301
  %311 = vst [vmem:[#allocation2 + $0x100] sm:$0xff] %v303
  %312 = vst [vmem:[#allocation2 + $0x108] sm:$0xff] %v304
  %313 = vst [vmem:[#allocation2 + $0x110] sm:$0xff] %v305
  %314 = vst [vmem:[#allocation2 + $0x118] sm:$0xff] %v306
  %315 = vrot.lane.b32.xlu0 %v118, 108
  %v316 = vpop.permute.xlu0 %315
  %317 = vrot.lane.b32.xlu0 %v119, 108
  %v318 = vpop.permute.xlu0 %317
  %319 = vrot.lane.b32.xlu0 %v120, 108
  %v320 = vpop.permute.xlu0 %319
  %321 = vrot.lane.b32.xlu0 %v121, 108
  %v322 = vpop.permute.xlu0 %321
  %323 = vrot.lane.b32.xlu0 0.0, 108
  %v324 = vpop.permute.xlu0 %323
  %vm325 = vcmask 883712
  %v326 = vsel %vm325, %v316, %v318
  %v327 = vsel %vm325, %v318, %v320
  %v328 = vsel %vm325, %v320, %v322
  %v329 = vsel %vm325, %v322, %v324
  %334 = vst [vmem:[#allocation2 + $0x120] sm:$0xff] %v326
  %335 = vst [vmem:[#allocation2 + $0x128] sm:$0xff] %v327
  %336 = vst [vmem:[#allocation2 + $0x130] sm:$0xff] %v328
  %337 = vst [vmem:[#allocation2 + $0x138] sm:$0xff] %v329
  %338 = vrot.lane.b32.xlu0 %v118, 96
  %v339 = vpop.permute.xlu0 %338
  %340 = vrot.lane.b32.xlu0 %v119, 96
  %v341 = vpop.permute.xlu0 %340
  %342 = vrot.lane.b32.xlu0 %v120, 96
  %v343 = vpop.permute.xlu0 %342
  %344 = vrot.lane.b32.xlu0 %v121, 96
  %v345 = vpop.permute.xlu0 %344
  %346 = vrot.lane.b32.xlu0 0.0, 96
  %v347 = vpop.permute.xlu0 %346
  %vm348 = vcmask 785408
  %v349 = vsel %vm348, %v339, %v341
  %v350 = vsel %vm348, %v341, %v343
  %v351 = vsel %vm348, %v343, %v345
  %v352 = vsel %vm348, %v345, %v347
  %357 = vst [vmem:[#allocation2 + $0x140] sm:$0xff] %v349
  %358 = vst [vmem:[#allocation2 + $0x148] sm:$0xff] %v350
  %359 = vst [vmem:[#allocation2 + $0x150] sm:$0xff] %v351
  %360 = vst [vmem:[#allocation2 + $0x158] sm:$0xff] %v352
  %361 = vrot.lane.b32.xlu0 %v118, 95
  %v362 = vpop.permute.xlu0 %361
  %363 = vrot.lane.b32.xlu0 %v119, 95
  %v364 = vpop.permute.xlu0 %363
  %365 = vrot.lane.b32.xlu0 %v120, 95
  %v366 = vpop.permute.xlu0 %365
  %367 = vrot.lane.b32.xlu0 %v121, 95
  %v368 = vpop.permute.xlu0 %367
  %369 = vrot.lane.b32.xlu0 0.0, 95
  %v370 = vpop.permute.xlu0 %369
  %vm371 = vcmask 777216
  %v372 = vsel %vm371, %v362, %v364
  %v373 = vsel %vm371, %v364, %v366
  %v374 = vsel %vm371, %v366, %v368
  %v375 = vsel %vm371, %v368, %v370
  %380 = vst [vmem:[#allocation2 + $0x160] sm:$0xff] %v372
  %381 = vst [vmem:[#allocation2 + $0x168] sm:$0xff] %v373
  %382 = vst [vmem:[#allocation2 + $0x170] sm:$0xff] %v374
  %383 = vst [vmem:[#allocation2 + $0x178] sm:$0xff] %v375
  %384 = vrot.lane.b32.xlu0 %v118, 94
  %v385 = vpop.permute.xlu0 %384
  %386 = vrot.lane.b32.xlu0 %v119, 94
  %v387 = vpop.permute.xlu0 %386
  %388 = vrot.lane.b32.xlu0 %v120, 94
  %v389 = vpop.permute.xlu0 %388
  %390 = vrot.lane.b32.xlu0 %v121, 94
  %v391 = vpop.permute.xlu0 %390
  %392 = vrot.lane.b32.xlu0 0.0, 94
  %v393 = vpop.permute.xlu0 %392
  %vm394 = vcmask 769024
  %v395 = vsel %vm394, %v385, %v387
  %v396 = vsel %vm394, %v387, %v389
  %v397 = vsel %vm394, %v389, %v391
  %v398 = vsel %vm394, %v391, %v393
  %403 = vst [vmem:[#allocation2 + $0x180] sm:$0xff] %v395
  %404 = vst [vmem:[#allocation2 + $0x188] sm:$0xff] %v396
  %405 = vst [vmem:[#allocation2 + $0x190] sm:$0xff] %v397
  %406 = vst [vmem:[#allocation2 + $0x198] sm:$0xff] %v398
  %407 = vrot.lane.b32.xlu0 %v118, 93
  %v408 = vpop.permute.xlu0 %407
  %409 = vrot.lane.b32.xlu0 %v119, 93
  %v410 = vpop.permute.xlu0 %409
  %411 = vrot.lane.b32.xlu0 %v120, 93
  %v412 = vpop.permute.xlu0 %411
  %413 = vrot.lane.b32.xlu0 %v121, 93
  %v414 = vpop.permute.xlu0 %413
  %415 = vrot.lane.b32.xlu0 0.0, 93
  %v416 = vpop.permute.xlu0 %415
  %vm417 = vcmask 760832
  %v418 = vsel %vm417, %v408, %v410
  %v419 = vsel %vm417, %v410, %v412
  %v420 = vsel %vm417, %v412, %v414
  %v421 = vsel %vm417, %v414, %v416
  %426 = vst [vmem:[#allocation2 + $0x1a0] sm:$0xff] %v418
  %427 = vst [vmem:[#allocation2 + $0x1a8] sm:$0xff] %v419
  %428 = vst [vmem:[#allocation2 + $0x1b0] sm:$0xff] %v420
  %429 = vst [vmem:[#allocation2 + $0x1b8] sm:$0xff] %v421
  %430 = vrot.lane.b32.xlu0 %v118, 92
  %v431 = vpop.permute.xlu0 %430
  %432 = vrot.lane.b32.xlu0 %v119, 92
  %v433 = vpop.permute.xlu0 %432
  %434 = vrot.lane.b32.xlu0 %v120, 92
  %v435 = vpop.permute.xlu0 %434
  %436 = vrot.lane.b32.xlu0 %v121, 92
  %v437 = vpop.permute.xlu0 %436
  %438 = vrot.lane.b32.xlu0 0.0, 92
  %v439 = vpop.permute.xlu0 %438
  %vm440 = vcmask 752640
  %v441 = vsel %vm440, %v431, %v433
  %v442 = vsel %vm440, %v433, %v435
  %v443 = vsel %vm440, %v435, %v437
  %v444 = vsel %vm440, %v437, %v439
  %449 = vst [vmem:[#allocation2 + $0x1c0] sm:$0xff] %v441
  %450 = vst [vmem:[#allocation2 + $0x1c8] sm:$0xff] %v442
  %451 = vst [vmem:[#allocation2 + $0x1d0] sm:$0xff] %v443
  %452 = vst [vmem:[#allocation2 + $0x1d8] sm:$0xff] %v444
  %v453 = vld [vmem:[%s3] sm:$0xff]
  %v454 = vld [vmem:[#allocation2] sm:$0xff]
  %v455 = vld [vmem:[#allocation2 + $0x8] sm:$0xff]
  %v456 = vld [vmem:[#allocation2 + $0x10] sm:$0xff]
  %v457 = vld [vmem:[#allocation2 + $0x18] sm:$0xff]
  %v458 = vld [vmem:[#allocation2 + $0x20] sm:$0xff]
  %v459 = vld [vmem:[#allocation2 + $0x28] sm:$0xff]
  %v460 = vld [vmem:[#allocation2 + $0x30] sm:$0xff]
  %v461 = vld [vmem:[#allocation2 + $0x38] sm:$0xff]
  %v462 = vld [vmem:[#allocation2 + $0x40] sm:$0xff]
  %v463 = vld [vmem:[#allocation2 + $0x48] sm:$0xff]
  %v464 = vld [vmem:[#allocation2 + $0x50] sm:$0xff]
  %v465 = vld [vmem:[#allocation2 + $0x58] sm:$0xff]
  %v466 = vld [vmem:[#allocation2 + $0x60] sm:$0xff]
  %v467 = vld [vmem:[#allocation2 + $0x68] sm:$0xff]
  %v468 = vld [vmem:[#allocation2 + $0x70] sm:$0xff]
  %v469 = vld [vmem:[#allocation2 + $0x78] sm:$0xff]
  %v470 = vld [vmem:[#allocation2 + $0x80] sm:$0xff]
  %v471 = vld [vmem:[#allocation2 + $0x88] sm:$0xff]
  %v472 = vld [vmem:[#allocation2 + $0x90] sm:$0xff]
  %v473 = vld [vmem:[#allocation2 + $0x98] sm:$0xff]
  %v474 = vld [vmem:[#allocation2 + $0xa0] sm:$0xff]
  %v475 = vld [vmem:[#allocation2 + $0xa8] sm:$0xff]
  %v476 = vld [vmem:[#allocation2 + $0xb0] sm:$0xff]
  %v477 = vld [vmem:[#allocation2 + $0xb8] sm:$0xff]
  %v478 = vld [vmem:[#allocation2 + $0xc0] sm:$0xff]
  %v479 = vld [vmem:[#allocation2 + $0xc8] sm:$0xff]
  %v480 = vld [vmem:[#allocation2 + $0xd0] sm:$0xff]
  %v481 = vld [vmem:[#allocation2 + $0xd8] sm:$0xff]
  %v482 = vld [vmem:[#allocation2 + $0xe0] sm:$0xff]
  %v483 = vld [vmem:[#allocation2 + $0xe8] sm:$0xff]
  %v484 = vld [vmem:[#allocation2 + $0xf0] sm:$0xff]
  %v485 = vld [vmem:[#allocation2 + $0xf8] sm:$0xff]
  %v486 = vld [vmem:[#allocation2 + $0x100] sm:$0xff]
  %v487 = vld [vmem:[#allocation2 + $0x108] sm:$0xff]
  %v488 = vld [vmem:[#allocation2 + $0x110] sm:$0xff]
  %v489 = vld [vmem:[#allocation2 + $0x118] sm:$0xff]
  %v490 = vld [vmem:[#allocation2 + $0x120] sm:$0xff]
  %v491 = vld [vmem:[#allocation2 + $0x128] sm:$0xff]
  %v492 = vld [vmem:[#allocation2 + $0x130] sm:$0xff]
  %v493 = vld [vmem:[#allocation2 + $0x138] sm:$0xff]
  %v494 = vld [vmem:[#allocation2 + $0x140] sm:$0xff]
  %v495 = vld [vmem:[#allocation2 + $0x148] sm:$0xff]
  %v496 = vld [vmem:[#allocation2 + $0x150] sm:$0xff]
  %v497 = vld [vmem:[#allocation2 + $0x158] sm:$0xff]
  %v498 = vld [vmem:[#allocation2 + $0x160] sm:$0xff]
  %v499 = vld [vmem:[#allocation2 + $0x168] sm:$0xff]
  %v500 = vld [vmem:[#allocation2 + $0x170] sm:$0xff]
  %v501 = vld [vmem:[#allocation2 + $0x178] sm:$0xff]
  %v502 = vld [vmem:[#allocation2 + $0x180] sm:$0xff]
  %v503 = vld [vmem:[#allocation2 + $0x188] sm:$0xff]
  %v504 = vld [vmem:[#allocation2 + $0x190] sm:$0xff]
  %v505 = vld [vmem:[#allocation2 + $0x198] sm:$0xff]
  %v506 = vld [vmem:[#allocation2 + $0x1a0] sm:$0xff]
  %v507 = vld [vmem:[#allocation2 + $0x1a8] sm:$0xff]
  %v508 = vld [vmem:[#allocation2 + $0x1b0] sm:$0xff]
  %v509 = vld [vmem:[#allocation2 + $0x1b8] sm:$0xff]
  %v510 = vld [vmem:[#allocation2 + $0x1c0] sm:$0xff]
  %v511 = vld [vmem:[#allocation2 + $0x1c8] sm:$0xff]
  %v512 = vld [vmem:[#allocation2 + $0x1d0] sm:$0xff]
  %v513 = vld [vmem:[#allocation2 + $0x1d8] sm:$0xff]
  %vm514 = vcmask 982016
  %v516 = vsel %vm514, %v453, 0
  %518 = vmatpush.msra.mxu0 0.0
  %519 = vmatpush.msra.mxu0 %v510
  %520 = vmatpush.msra.mxu0 %v506
  %521 = vmatpush.msra.mxu0 %v502
  %522 = vmatpush.msra.mxu0 %v498
  %523 = vmatpush.msra.mxu0 %v494
  %524 = vmatpush.msra.mxu0 %v490
  %525 = vmatpush.msra.mxu0 %v486
  %526 = vmatpush.msra.mxu0 %v482
  %527 = vmatpush.msra.mxu0 %v478
  %528 = vmatpush.msra.mxu0 %v474
  %529 = vmatpush.msra.mxu0 %v470
  %530 = vmatpush.msra.mxu0 %v466
  %531 = vmatpush.msra.mxu0 %v462
  %532 = vmatpush.msra.mxu0 %v458
  %533 = vmatpush.msra.mxu0 %v454
  %534 = vmatmul.f32.gmra.mxu0 %v516
  %v535 = vpop.f32.mrf.mxu0
  %v536 = vadd.f32 0.0, %v535
  %537 = vdwg.mxu0
  %538 = vmatpush.msra.mxu0 0.0
  %539 = vmatpush.msra.mxu0 %v511
  %540 = vmatpush.msra.mxu0 %v507
  %541 = vmatpush.msra.mxu0 %v503
  %542 = vmatpush.msra.mxu0 %v499
  %543 = vmatpush.msra.mxu0 %v495
  %544 = vmatpush.msra.mxu0 %v491
  %545 = vmatpush.msra.mxu0 %v487
  %546 = vmatpush.msra.mxu0 %v483
  %547 = vmatpush.msra.mxu0 %v479
  %548 = vmatpush.msra.mxu0 %v475
  %549 = vmatpush.msra.mxu0 %v471
  %550 = vmatpush.msra.mxu0 %v467
  %551 = vmatpush.msra.mxu0 %v463
  %552 = vmatpush.msra.mxu0 %v459
  %553 = vmatpush.msra.mxu0 %v455
  %554 = vmatmul.f32.gmra.mxu0 %v516
  %v555 = vpop.f32.mrf.mxu0
  %v556 = vadd.f32 0.0, %v555
  %557 = vdwg.mxu0
  %558 = vmatpush.msra.mxu0 0.0
  %559 = vmatpush.msra.mxu0 %v512
  %560 = vmatpush.msra.mxu0 %v508
  %561 = vmatpush.msra.mxu0 %v504
  %562 = vmatpush.msra.mxu0 %v500
  %563 = vmatpush.msra.mxu0 %v496
  %564 = vmatpush.msra.mxu0 %v492
  %565 = vmatpush.msra.mxu0 %v488
  %566 = vmatpush.msra.mxu0 %v484
  %567 = vmatpush.msra.mxu0 %v480
  %568 = vmatpush.msra.mxu0 %v476
  %569 = vmatpush.msra.mxu0 %v472
  %570 = vmatpush.msra.mxu0 %v468
  %571 = vmatpush.msra.mxu0 %v464
  %572 = vmatpush.msra.mxu0 %v460
  %573 = vmatpush.msra.mxu0 %v456
  %574 = vmatmul.f32.gmra.mxu0 %v516
  %v575 = vpop.f32.mrf.mxu0
  %v576 = vadd.f32 0.0, %v575
  %577 = vdwg.mxu0
  %578 = vmatpush.msra.mxu0 0.0
  %579 = vmatpush.msra.mxu0 %v513
  %580 = vmatpush.msra.mxu0 %v509
  %581 = vmatpush.msra.mxu0 %v505
  %582 = vmatpush.msra.mxu0 %v501
  %583 = vmatpush.msra.mxu0 %v497
  %584 = vmatpush.msra.mxu0 %v493
  %585 = vmatpush.msra.mxu0 %v489
  %586 = vmatpush.msra.mxu0 %v485
  %587 = vmatpush.msra.mxu0 %v481
  %588 = vmatpush.msra.mxu0 %v477
  %589 = vmatpush.msra.mxu0 %v473
  %590 = vmatpush.msra.mxu0 %v469
  %591 = vmatpush.msra.mxu0 %v465
  %592 = vmatpush.msra.mxu0 %v461
  %593 = vmatpush.msra.mxu0 %v457
  %594 = vmatmul.f32.gmra.mxu0 %v516
  %v595 = vpop.f32.mrf.mxu0
  %v596 = vadd.f32 0.0, %v595
  %597 = vdwg.mxu0
  %v598 = vlaneseq
  %v599 = vshrl.u32 %v598, 7
  %v600 = vadd.s32 %v599, 8
  %v601 = vadd.s32 %v599, 16
  %v602 = vadd.s32 %v599, 24
  %v603 = vadd.s32 %v599, 32
  %v604 = vadd.s32 %v599, 40
  %v605 = vadd.s32 %v599, 48
  %v606 = vadd.s32 %v599, 56
  %v607 = vadd.s32 %v599, 64
  %v608 = vadd.s32 %v599, 72
  %v609 = vadd.s32 %v599, 80
  %v610 = vadd.s32 %v599, 88
  %v611 = vadd.s32 %v599, 96
  %v612 = vadd.s32 %v599, 104
  %v613 = vadd.s32 %v599, 112
  %v614 = vadd.s32 %v599, 120
  %v615 = vadd.s32 %v599, 128
  %v616 = vadd.s32 %v599, 136
  %v617 = vadd.s32 %v599, 144
  %v618 = vadd.s32 %v599, 152
  %v619 = vadd.s32 %v599, 160
  %v620 = vadd.s32 %v599, 168
  %v621 = vadd.s32 %v599, 176
  %v622 = vadd.s32 %v599, 184
  %v623 = vadd.s32 %v599, 192
  %v624 = vadd.s32 %v599, 200
  %v625 = vadd.s32 %v599, 208
  %v626 = vadd.s32 %v599, 216
  %v627 = vadd.s32 %v599, 224
  %v628 = vadd.s32 %v599, 232
  %v629 = vadd.s32 %v599, 240
  %v630 = vadd.s32 %v599, 248
  %v631 = vadd.s32 %v599, 256
  %v632 = vadd.s32 %v599, 264
  %v633 = vadd.s32 %v599, 272
  %v634 = vadd.s32 %v599, 280
  %v635 = vadd.s32 %v599, 288
  %v636 = vadd.s32 %v599, 296
  %v637 = vadd.s32 %v599, 304
  %v638 = vadd.s32 %v599, 312
  %v639 = vadd.s32 %v599, 320
  %v640 = vadd.s32 %v599, 328
  %v641 = vadd.s32 %v599, 336
  %v642 = vadd.s32 %v599, 344
  %v643 = vadd.s32 %v599, 352
  %v644 = vadd.s32 %v599, 360
  %v645 = vadd.s32 %v599, 368
  %v646 = vadd.s32 %v599, 376
  %v647 = vadd.s32 %v599, 384
  %v648 = vadd.s32 %v599, 392
  %v649 = vadd.s32 %v599, 400
  %v650 = vadd.s32 %v599, 408
  %v651 = vadd.s32 %v599, 416
  %v652 = vadd.s32 %v599, 424
  %v653 = vadd.s32 %v599, 432
  %v654 = vadd.s32 %v599, 440
  %v655 = vadd.s32 %v599, 448
  %v656 = vadd.s32 %v599, 456
  %v657 = vadd.s32 %v599, 464
  %v658 = vadd.s32 %v599, 472
  %v659 = vadd.s32 %v599, 480
  %v660 = vadd.s32 %v599, 488
  %v661 = vadd.s32 %v599, 496
  %v662 = vadd.s32 %v599, 504
  %v663 = vld [vmem:[%s5] sm:$0x1]
  %v664 = vperm.slane %v663, 0
  %vm665 = vcmp.eq.s32.totalorder %v599, %v664
  %vm666 = vcmp.eq.s32.totalorder %v600, %v664
  %vm667 = vcmp.eq.s32.totalorder %v601, %v664
  %vm668 = vcmp.eq.s32.totalorder %v602, %v664
  %vm669 = vcmp.eq.s32.totalorder %v603, %v664
  %vm670 = vcmp.eq.s32.totalorder %v604, %v664
  %vm671 = vcmp.eq.s32.totalorder %v605, %v664
  %vm672 = vcmp.eq.s32.totalorder %v606, %v664
  %vm673 = vcmp.eq.s32.totalorder %v607, %v664
  %vm674 = vcmp.eq.s32.totalorder %v608, %v664
  %vm675 = vcmp.eq.s32.totalorder %v609, %v664
  %vm676 = vcmp.eq.s32.totalorder %v610, %v664
  %vm677 = vcmp.eq.s32.totalorder %v611, %v664
  %vm678 = vcmp.eq.s32.totalorder %v612, %v664
  %vm679 = vcmp.eq.s32.totalorder %v613, %v664
  %vm680 = vcmp.eq.s32.totalorder %v614, %v664
  %vm681 = vcmp.eq.s32.totalorder %v615, %v664
  %vm682 = vcmp.eq.s32.totalorder %v616, %v664
  %vm683 = vcmp.eq.s32.totalorder %v617, %v664
  %vm684 = vcmp.eq.s32.totalorder %v618, %v664
  %vm685 = vcmp.eq.s32.totalorder %v619, %v664
  %vm686 = vcmp.eq.s32.totalorder %v620, %v664
  %vm687 = vcmp.eq.s32.totalorder %v621, %v664
  %vm688 = vcmp.eq.s32.totalorder %v622, %v664
  %vm689 = vcmp.eq.s32.totalorder %v623, %v664
  %vm690 = vcmp.eq.s32.totalorder %v624, %v664
  %vm691 = vcmp.eq.s32.totalorder %v625, %v664
  %vm692 = vcmp.eq.s32.totalorder %v626, %v664
  %vm693 = vcmp.eq.s32.totalorder %v627, %v664
  %vm694 = vcmp.eq.s32.totalorder %v628, %v664
  %vm695 = vcmp.eq.s32.totalorder %v629, %v664
  %vm696 = vcmp.eq.s32.totalorder %v630, %v664
  %vm697 = vcmp.eq.s32.totalorder %v631, %v664
  %vm698 = vcmp.eq.s32.totalorder %v632, %v664
  %vm699 = vcmp.eq.s32.totalorder %v633, %v664
  %vm700 = vcmp.eq.s32.totalorder %v634, %v664
  %vm701 = vcmp.eq.s32.totalorder %v635, %v664
  %vm702 = vcmp.eq.s32.totalorder %v636, %v664
  %vm703 = vcmp.eq.s32.totalorder %v637, %v664
  %vm704 = vcmp.eq.s32.totalorder %v638, %v664
  %vm705 = vcmp.eq.s32.totalorder %v639, %v664
  %vm706 = vcmp.eq.s32.totalorder %v640, %v664
  %vm707 = vcmp.eq.s32.totalorder %v641, %v664
  %vm708 = vcmp.eq.s32.totalorder %v642, %v664
  %vm709 = vcmp.eq.s32.totalorder %v643, %v664
  %vm710 = vcmp.eq.s32.totalorder %v644, %v664
  %vm711 = vcmp.eq.s32.totalorder %v645, %v664
  %vm712 = vcmp.eq.s32.totalorder %v646, %v664
  %vm713 = vcmp.eq.s32.totalorder %v647, %v664
  %vm714 = vcmp.eq.s32.totalorder %v648, %v664
  %vm715 = vcmp.eq.s32.totalorder %v649, %v664
  %vm716 = vcmp.eq.s32.totalorder %v650, %v664
  %vm717 = vcmp.eq.s32.totalorder %v651, %v664
  %vm718 = vcmp.eq.s32.totalorder %v652, %v664
  %vm719 = vcmp.eq.s32.totalorder %v653, %v664
  %vm720 = vcmp.eq.s32.totalorder %v654, %v664
  %vm721 = vcmp.eq.s32.totalorder %v655, %v664
  %vm722 = vcmp.eq.s32.totalorder %v656, %v664
  %vm723 = vcmp.eq.s32.totalorder %v657, %v664
  %vm724 = vcmp.eq.s32.totalorder %v658, %v664
  %vm725 = vcmp.eq.s32.totalorder %v659, %v664
  %vm726 = vcmp.eq.s32.totalorder %v660, %v664
  %vm727 = vcmp.eq.s32.totalorder %v661, %v664
  %vm728 = vcmp.eq.s32.totalorder %v662, %v664
  %v729 = vsel %vm665, 1, 0
  %v730 = vsel %vm666, 1, 0
  %v731 = vsel %vm667, 1, 0
  %v732 = vsel %vm668, 1, 0
  %v733 = vsel %vm669, 1, 0
  %v734 = vsel %vm670, 1, 0
  %v735 = vsel %vm671, 1, 0
  %v736 = vsel %vm672, 1, 0
  %v737 = vsel %vm673, 1, 0
  %v738 = vsel %vm674, 1, 0
  %v739 = vsel %vm675, 1, 0
  %v740 = vsel %vm676, 1, 0
  %v741 = vsel %vm677, 1, 0
  %v742 = vsel %vm678, 1, 0
  %v743 = vsel %vm679, 1, 0
  %v744 = vsel %vm680, 1, 0
  %v745 = vsel %vm681, 1, 0
  %v746 = vsel %vm682, 1, 0
  %v747 = vsel %vm683, 1, 0
  %v748 = vsel %vm684, 1, 0
  %v749 = vsel %vm685, 1, 0
  %v750 = vsel %vm686, 1, 0
  %v751 = vsel %vm687, 1, 0
  %v752 = vsel %vm688, 1, 0
  %v753 = vsel %vm689, 1, 0
  %v754 = vsel %vm690, 1, 0
  %v755 = vsel %vm691, 1, 0
  %v756 = vsel %vm692, 1, 0
  %v757 = vsel %vm693, 1, 0
  %v758 = vsel %vm694, 1, 0
  %v759 = vsel %vm695, 1, 0
  %v760 = vsel %vm696, 1, 0
  %v761 = vsel %vm697, 1, 0
  %v762 = vsel %vm698, 1, 0
  %v763 = vsel %vm699, 1, 0
  %v764 = vsel %vm700, 1, 0
  %v765 = vsel %vm701, 1, 0
  %v766 = vsel %vm702, 1, 0
  %v767 = vsel %vm703, 1, 0
  %v768 = vsel %vm704, 1, 0
  %v769 = vsel %vm705, 1, 0
  %v770 = vsel %vm706, 1, 0
  %v771 = vsel %vm707, 1, 0
  %v772 = vsel %vm708, 1, 0
  %v773 = vsel %vm709, 1, 0
  %v774 = vsel %vm710, 1, 0
  %v775 = vsel %vm711, 1, 0
  %v776 = vsel %vm712, 1, 0
  %v777 = vsel %vm713, 1, 0
  %v778 = vsel %vm714, 1, 0
  %v779 = vsel %vm715, 1, 0
  %v780 = vsel %vm716, 1, 0
  %v781 = vsel %vm717, 1, 0
  %v782 = vsel %vm718, 1, 0
  %v783 = vsel %vm719, 1, 0
  %v784 = vsel %vm720, 1, 0
  %v785 = vsel %vm721, 1, 0
  %v786 = vsel %vm722, 1, 0
  %v787 = vsel %vm723, 1, 0
  %v788 = vsel %vm724, 1, 0
  %v789 = vsel %vm725, 1, 0
  %v790 = vsel %vm726, 1, 0
  %v791 = vsel %vm727, 1, 0
  %v792 = vsel %vm728, 1, 0
  %v793 = vcvt.s32.f32 %v729
  %v794 = vcvt.s32.f32 %v730
  %v795 = vcvt.s32.f32 %v731
  %v796 = vcvt.s32.f32 %v732
  %v797 = vcvt.s32.f32 %v733
  %v798 = vcvt.s32.f32 %v734
  %v799 = vcvt.s32.f32 %v735
  %v800 = vcvt.s32.f32 %v736
  %v801 = vcvt.s32.f32 %v737
  %v802 = vcvt.s32.f32 %v738
  %v803 = vcvt.s32.f32 %v739
  %v804 = vcvt.s32.f32 %v740
  %v805 = vcvt.s32.f32 %v741
  %v806 = vcvt.s32.f32 %v742
  %v807 = vcvt.s32.f32 %v743
  %v808 = vcvt.s32.f32 %v744
  %v809 = vcvt.s32.f32 %v745
  %v810 = vcvt.s32.f32 %v746
  %v811 = vcvt.s32.f32 %v747
  %v812 = vcvt.s32.f32 %v748
  %v813 = vcvt.s32.f32 %v749
  %v814 = vcvt.s32.f32 %v750
  %v815 = vcvt.s32.f32 %v751
  %v816 = vcvt.s32.f32 %v752
  %v817 = vcvt.s32.f32 %v753
  %v818 = vcvt.s32.f32 %v754
  %v819 = vcvt.s32.f32 %v755
  %v820 = vcvt.s32.f32 %v756
  %v821 = vcvt.s32.f32 %v757
  %v822 = vcvt.s32.f32 %v758
  %v823 = vcvt.s32.f32 %v759
  %v824 = vcvt.s32.f32 %v760
  %v825 = vcvt.s32.f32 %v761
  %v826 = vcvt.s32.f32 %v762
  %v827 = vcvt.s32.f32 %v763
  %v828 = vcvt.s32.f32 %v764
  %v829 = vcvt.s32.f32 %v765
  %v830 = vcvt.s32.f32 %v766
  %v831 = vcvt.s32.f32 %v767
  %v832 = vcvt.s32.f32 %v768
  %v833 = vcvt.s32.f32 %v769
  %v834 = vcvt.s32.f32 %v770
  %v835 = vcvt.s32.f32 %v771
  %v836 = vcvt.s32.f32 %v772
  %v837 = vcvt.s32.f32 %v773
  %v838 = vcvt.s32.f32 %v774
  %v839 = vcvt.s32.f32 %v775
  %v840 = vcvt.s32.f32 %v776
  %v841 = vcvt.s32.f32 %v777
  %v842 = vcvt.s32.f32 %v778
  %v843 = vcvt.s32.f32 %v779
  %v844 = vcvt.s32.f32 %v780
  %v845 = vcvt.s32.f32 %v781
  %v846 = vcvt.s32.f32 %v782
  %v847 = vcvt.s32.f32 %v783
  %v848 = vcvt.s32.f32 %v784
  %v849 = vcvt.s32.f32 %v785
  %v850 = vcvt.s32.f32 %v786
  %v851 = vcvt.s32.f32 %v787
  %v852 = vcvt.s32.f32 %v788
  %v853 = vcvt.s32.f32 %v789
  %v854 = vcvt.s32.f32 %v790
  %v855 = vcvt.s32.f32 %v791
  %v856 = vcvt.s32.f32 %v792
  %v857 = vld [vmem:[%s4] sm:$0xff]
  %859 = vset.pattern.permute.xlu0 0
  %860 = vperm.xlu0 %859, %v857
  %v861 = vpop.permute.xlu0 %860
  %863 = vmatpush.msra.mxu0 %v808
  %864 = vmatpush.msra.mxu0 %v807
  %865 = vmatpush.msra.mxu0 %v806
  %866 = vmatpush.msra.mxu0 %v805
  %867 = vmatpush.msra.mxu0 %v804
  %868 = vmatpush.msra.mxu0 %v803
  %869 = vmatpush.msra.mxu0 %v802
  %870 = vmatpush.msra.mxu0 %v801
  %871 = vmatpush.msra.mxu0 %v800
  %872 = vmatpush.msra.mxu0 %v799
  %873 = vmatpush.msra.mxu0 %v798
  %874 = vmatpush.msra.mxu0 %v797
  %875 = vmatpush.msra.mxu0 %v796
  %876 = vmatpush.msra.mxu0 %v795
  %877 = vmatpush.msra.mxu0 %v794
  %878 = vmatpush.msra.mxu0 %v793
  %879 = vmatmul.f32.gmra.mxu0 %v536
  %v880 = vpop.f32.mrf.mxu0
  %v881 = vadd.f32 %v861, %v880
  %882 = vdwg.mxu0
  %883 = vmatpush.msra.mxu0 %v824
  %884 = vmatpush.msra.mxu0 %v823
  %885 = vmatpush.msra.mxu0 %v822
  %886 = vmatpush.msra.mxu0 %v821
  %887 = vmatpush.msra.mxu0 %v820
  %888 = vmatpush.msra.mxu0 %v819
  %889 = vmatpush.msra.mxu0 %v818
  %890 = vmatpush.msra.mxu0 %v817
  %891 = vmatpush.msra.mxu0 %v816
  %892 = vmatpush.msra.mxu0 %v815
  %893 = vmatpush.msra.mxu0 %v814
  %894 = vmatpush.msra.mxu0 %v813
  %895 = vmatpush.msra.mxu0 %v812
  %896 = vmatpush.msra.mxu0 %v811
  %897 = vmatpush.msra.mxu0 %v810
  %898 = vmatpush.msra.mxu0 %v809
  %899 = vmatmul.f32.gmra.mxu0 %v556
  %v900 = vpop.f32.mrf.mxu0
  %v901 = vadd.f32 %v881, %v900
  %902 = vdwg.mxu0
  %903 = vmatpush.msra.mxu0 %v840
  %904 = vmatpush.msra.mxu0 %v839
  %905 = vmatpush.msra.mxu0 %v838
  %906 = vmatpush.msra.mxu0 %v837
  %907 = vmatpush.msra.mxu0 %v836
  %908 = vmatpush.msra.mxu0 %v835
  %909 = vmatpush.msra.mxu0 %v834
  %910 = vmatpush.msra.mxu0 %v833
  %911 = vmatpush.msra.mxu0 %v832
  %912 = vmatpush.msra.mxu0 %v831
  %913 = vmatpush.msra.mxu0 %v830
  %914 = vmatpush.msra.mxu0 %v829
  %915 = vmatpush.msra.mxu0 %v828
  %916 = vmatpush.msra.mxu0 %v827
  %917 = vmatpush.msra.mxu0 %v826
  %918 = vmatpush.msra.mxu0 %v825
  %919 = vmatmul.f32.gmra.mxu0 %v576
  %v920 = vpop.f32.mrf.mxu0
  %v921 = vadd.f32 %v901, %v920
  %922 = vdwg.mxu0
  %923 = vmatpush.msra.mxu0 %v856
  %924 = vmatpush.msra.mxu0 %v855
  %925 = vmatpush.msra.mxu0 %v854
  %926 = vmatpush.msra.mxu0 %v853
  %927 = vmatpush.msra.mxu0 %v852
  %928 = vmatpush.msra.mxu0 %v851
  %929 = vmatpush.msra.mxu0 %v850
  %930 = vmatpush.msra.mxu0 %v849
  %931 = vmatpush.msra.mxu0 %v848
  %932 = vmatpush.msra.mxu0 %v847
  %933 = vmatpush.msra.mxu0 %v846
  %934 = vmatpush.msra.mxu0 %v845
  %935 = vmatpush.msra.mxu0 %v844
  %936 = vmatpush.msra.mxu0 %v843
  %937 = vmatpush.msra.mxu0 %v842
  %938 = vmatpush.msra.mxu0 %v841
  %939 = vmatmul.f32.gmra.mxu0 %v596
  %v940 = vpop.f32.mrf.mxu0
  %v941 = vadd.f32 %v921, %v940
  %942 = vdwg.mxu0
  %v943 = vtanh.pop %v941
  %944 = vst [vmem:[%s6] sm:$0xff] %v943
  // Predicated region
  $region26: #{model_forward.1} parent=0 // pred_check
    _
  $region27: #{model_forward.1} parent=0 // pred_check_branch
    %946 = sbr.rel (0) target = $region29
  $region28: #{model_forward.1} parent=0 // pred_region
    _
  $region29: #{model_forward.1} parent=0 // pred_fallthru
    _
  // Predicated region
  $region30: #{model_forward.1} parent=0 // pred_check
    _
  $region31: #{model_forward.1} parent=0 // pred_check_branch
    %948 = sbr.rel (0) target = $region33
  $region32: #{model_forward.1} parent=0 // pred_region
    _
  $region33: #{model_forward.1} parent=0 // pred_fallthru
    _

</llo_original>
